<compile_context>
chip_gen: v7x
topology: tpu7x:2x2x1
jax: 0.10.0
libtpu: 0.0.40
codegen_flags: <defaults>
</compile_context>

<pallas_src>
import functools

import jax
import jax.numpy as jnp
from jax.experimental import pallas as pl
from jax.experimental.pallas import tpu as pltpu

NEIGHBOR_NUM = 4
BN_EPS = 1e-5
NORM_EPS = 1e-12
_MIB = 1024 * 1024


# ---------------------------------------------------------------------------
# Pass 1: token mean  f_v = f_u.mean(dim=-2), streamed/pipelined over (B, S).
# ---------------------------------------------------------------------------
def _token_mean_kernel(f_u_ref, f_v_ref, *, inv_s):
    s = pl.program_id(1)
    # f32-accumulated partial sum over this S-slice; no full f32 upcast temp.
    psum = jnp.sum(f_u_ref[...], axis=2, dtype=jnp.float32) * inv_s

    @pl.when(s == 0)
    def _():
        f_v_ref[...] = psum

    @pl.when(s != 0)
    def _():
        f_v_ref[...] += psum


def _largest_divisor_leq(n, cap):
    cap = int(max(1, min(n, cap)))
    for d in range(cap, 0, -1):
        if n % d == 0:
            return d
    return 1


def _pick_s_tile(s, cap_elems):
    # Keep the second-minor block dim a multiple of 8 (or the full extent) so
    # the (8, 128) tiling constraint holds whenever S is split.
    valid = [d for d in range(1, s + 1) if s % d == 0 and (d % 8 == 0 or d == s)]
    fits = [d for d in valid if d <= cap_elems]
    return max(fits) if fits else min(valid)


def token_mean(f_u):
    B, N, S, C = f_u.shape
    itemsize = jnp.dtype(f_u.dtype).itemsize

    # Generation-aware budgets: v5e/v6e have 128 MiB VMEM/core, v7x has 64 MiB.
    try:
        vmem_cap = pltpu.get_tpu_info().vmem_capacity_bytes
    except Exception:
        vmem_cap = 64 * _MIB            # conservative (v7x) default
    tile_target = 16 * _MIB if vmem_cap >= 100 * _MIB else 8 * _MIB

    row_bytes = N * S * C * itemsize
    if row_bytes <= tile_target:
        # Block several batch rows per grid step (amortize per-step overhead).
        bt = _largest_divisor_leq(B, max(1, tile_target // row_bytes))
        st = S
    else:
        # One batch row exceeds the per-buffer budget: split the token axis
        # and accumulate partial sums into the resident f32 output block.
        bt = 1
        st = _pick_s_tile(S, max(1, tile_target // (N * C * itemsize)))

    in_tile = bt * N * st * C * itemsize
    out_tile = bt * N * C * 4
    needed = 2 * (in_tile + out_tile) + 2 * _MIB      # double-buffered + slack
    vmem_limit = int(min(max(needed, 8 * _MIB), vmem_cap - 16 * _MIB))

    kernel = functools.partial(_token_mean_kernel, inv_s=1.0 / S)
    return pl.pallas_call(
        kernel,
        out_shape=jax.ShapeDtypeStruct((B, N, C), jnp.float32),
        grid=(B // bt, S // st),
        in_specs=[pl.BlockSpec((bt, N, st, C), lambda b, s: (b, 0, s, 0))],
        out_specs=pl.BlockSpec((bt, N, C), lambda b, s: (b, 0, 0)),
        compiler_params=pltpu.CompilerParams(
            dimension_semantics=("parallel", "arbitrary"),   # B sharded on v7x
            vmem_limit_bytes=vmem_limit),
        cost_estimate=pl.CostEstimate(
            flops=B * N * S * C + B * N * C,
            transcendentals=0,
            bytes_accessed=B * N * S * C * itemsize + B * N * C * 4),
    )(f_u)


# ---------------------------------------------------------------------------
# Pass 2: GNN ('dots' metric) + cosine-similarity head on (B, N, C).
# ---------------------------------------------------------------------------
def _gnn_head_kernel(f_v_ref, w_ref, b_ref, gamma_ref, beta_ref, sc_ref,
                     cl_ref, *, neighbor_num):
    x = f_v_ref[...]                            # (B, N, C) f32
    B, N, C = x.shape

    # ---- similarity (detached in torch; only values matter) ----
    si = jnp.einsum('bic,bkc->bik', x, x,
                    preferred_element_type=jnp.float32)        # (B, N, N)

    # k-th largest per row, ties included (== torch.topk values[..., -1]):
    # thr = max{ v in row : count(row >= v) >= k }, built from (k-1) extra
    # row-max passes over the (B,N,N) matrix -- no O(N^3) compare tensor.
    kf = float(neighbor_num)
    thr = jnp.max(si, axis=-1, keepdims=True)                  # (B, N, 1)
    cnt = jnp.sum((si >= thr).astype(jnp.float32), axis=-1, keepdims=True)
    work = jnp.where(si >= thr, -jnp.inf, si)
    for _ in range(neighbor_num - 1):
        nxt = jnp.max(work, axis=-1, keepdims=True)
        nxt_cnt = cnt + jnp.sum((work >= nxt).astype(jnp.float32),
                                axis=-1, keepdims=True)
        need_more = cnt < kf
        thr = jnp.where(need_more, nxt, thr)
        cnt = jnp.where(need_more, nxt_cnt, cnt)
        work = jnp.where(work >= nxt, -jnp.inf, work)

    adj = (si >= thr).astype(jnp.float32)                      # (B, N, N)

    # normalize_digraph: A = D^{-1/2} adj D^{-1/2}  (deg >= neighbor_num > 0)
    deg = jnp.sum(adj, axis=-1)                                # (B, N)
    dinv = jax.lax.rsqrt(deg)
    A = adj * dinv[:, :, None] * dinv[:, None, :]

    # ---- fused V/U linear: one bf16 MXU matmul, f32 accumulation ----
    # w_ref: (C, 2C) bf16 = [V.weight^T | U.weight^T]; b_ref: (1, 2C) f32.
    # Mosaic's dot_general wants 2-D (or batch-matched 3-D) operands, so the
    # (B,N,C)->(B*N,C) flatten is kept; it is applied to the bf16 copy so the
    # unavoidable relayout (N is not a multiple of 8) moves half the bytes.
    x2 = x.astype(jnp.bfloat16).reshape(B * N, C)
    y2 = jnp.dot(x2, w_ref[...], preferred_element_type=jnp.float32)
    y2 = y2 + b_ref[...]                                       # (B*N, 2C)
    Vx = y2[:, :C].reshape(B, N, C)
    Ux = y2[:, C:].reshape(B, N, C)

    # ---- agg = A @ V(x): single batched MXU contraction (MXU otherwise idle;
    #      N -> 128 padding is free vs. the former O(N) VPU/XLU loop) ----
    agg = jnp.einsum('bij,bjc->bic', A, Vx,
                     preferred_element_type=jnp.float32)       # (B, N, C)
    y = agg + Ux

    # ---- BatchNorm1d(num_classes): training mode, batch stats, biased var ----
    mu = jnp.mean(jnp.mean(y, axis=2, keepdims=True), axis=0, keepdims=True)
    var = jnp.mean(jnp.mean((y - mu) ** 2, axis=2, keepdims=True),
                   axis=0, keepdims=True)                      # (1, N, 1)
    # gamma/beta arrive pre-shaped (1, N, 1): per-class scalars consumed as a
    # broadcast along C, so N lives on the sublane axis (no in-kernel reshape).
    y_bn = (y - mu) * jax.lax.rsqrt(var + BN_EPS) * gamma_ref[...] + beta_ref[...]
    f_v = jnp.maximum(x + y_bn, 0.0)                           # ReLU

    # ---- classification head: cosine similarity with relu(sc) ----
    sc = jnp.maximum(sc_ref[...], 0.0)                         # (N, C)
    sc = sc / jnp.maximum(
        jnp.sqrt(jnp.sum(sc * sc, axis=-1, keepdims=True)), NORM_EPS)
    cl = f_v / jnp.maximum(
        jnp.sqrt(jnp.sum(f_v * f_v, axis=-1, keepdims=True)), NORM_EPS)
    cl_ref[...] = jnp.sum(cl * sc[None], axis=-1).astype(cl_ref.dtype)


def gnn_head(f_v, params, neighbor_num):
    B, N, C = f_v.shape
    vmem = pl.BlockSpec(memory_space=pltpu.MemorySpace.VMEM)
    kernel = functools.partial(_gnn_head_kernel, neighbor_num=neighbor_num)
    w_bf16 = params['Wf_t'].astype(jnp.bfloat16)               # (C, 2C)
    flops = (2 * B * N * C * 2 * C          # fused V/U matmul
             + 2 * B * N * N * C            # si = x x^T
             + 2 * B * N * N * C            # A @ V(x)
             + 16 * B * N * C)              # elementwise / BN / head
    bytes_accessed = (f_v.size * 4 + w_bf16.size * 2 + 2 * C * 4
                      + params['sc'].size * 4 + 2 * N * 4 + B * N * 4)
    # NOTE: pass 2 is tiny and runs ungridded on a single TensorCore; a batch
    # split with two-phase BN statistics could use both v7x cores but is not
    # worth the complexity at these sizes (pass 1 dominates).
    return pl.pallas_call(
        kernel,
        out_shape=jax.ShapeDtypeStruct((B, N), jnp.float32),
        in_specs=[vmem] * 6,
        out_specs=vmem,
        compiler_params=pltpu.CompilerParams(vmem_limit_bytes=48 * _MIB),
        cost_estimate=pl.CostEstimate(
            flops=flops, transcendentals=2 * B * N,
            bytes_accessed=bytes_accessed),
    )(f_v, w_bf16, params['bf'], params['gamma'], params['beta'],
      params['sc'])


def mefarg2_forward(f_u, params, neighbor_num=NEIGHBOR_NUM):
    """cl = MEFARG2.forward(f_u), f_u of shape (B, num_classes, tokens, C).

    f_u may be float32 or (preferably) bfloat16: pass 1 is HBM-bandwidth-bound
    and bf16 halves its bytes; accumulation is always float32.
    """
    f_v = token_mean(f_u)                     # (B, N, C) f32, streamed pass
    return gnn_head(f_v, params, neighbor_num)


def init_params(key, n, c):
    """Deterministic parameter init matching the module's shapes.

    GNN.U / GNN.V: Linear(c, c), weight ~ N(0, sqrt(2/c)); bnv: gamma=1, beta=0.
    The two linears are pre-fused: Wf_t = [V.weight^T | U.weight^T]  (c, 2c),
    bf = [V.bias | U.bias]  (1, 2c), so the kernel issues a single MXU matmul.
    gamma/beta are stored as (1, n, 1) so the kernel consumes them without a
    layout change. NOTE: MEFARG2.__init__ leaves sc at zeros, which would make
    the output identically zero; a deterministic xavier-style init is used
    instead so the kernel exercises the full compute path.
    """
    k1, k2, k3, k4, k5 = jax.random.split(key, 5)
    std = (2.0 / c) ** 0.5
    Uw = jax.random.normal(k1, (c, c), jnp.float32) * std
    Vw = jax.random.normal(k2, (c, c), jnp.float32) * std
    bound = 1.0 / (c ** 0.5)
    Ub = jax.random.uniform(k3, (1, c), jnp.float32, -bound, bound)
    Vb = jax.random.uniform(k4, (1, c), jnp.float32, -bound, bound)
    gamma = jnp.ones((1, n, 1), jnp.float32)
    beta = jnp.zeros((1, n, 1), jnp.float32)
    limit = (6.0 / (n + c)) ** 0.5
    sc = jax.random.uniform(k5, (n, c), jnp.float32, -limit, limit)
    Wf_t = jnp.concatenate([Vw.T, Uw.T], axis=1)      # (c, 2c)
    bf = jnp.concatenate([Vb, Ub], axis=1)            # (1, 2c)
    return dict(Wf_t=Wf_t, bf=bf, gamma=gamma, beta=beta, sc=sc)


if __name__ == "__main__":
    # Small stand-in shapes consistent with the module:
    #   B=2 batch, N=6 (num_classes), S=8 tokens, C=128 (stand-in for 512).
    B, N, S, C = 2, 6, 8, 128
    key = jax.random.PRNGKey(0)
    kx, kp = jax.random.split(key)
    # Activations arrive as bf16 (halves HBM traffic of the memory-bound mean
    # pass); casting inside the wrapper would add an extra HBM round trip, so
    # the cast happens at the producer.  Kernels accumulate in f32.
    f_u = jax.random.normal(kx, (B, N, S, C), jnp.float32).astype(jnp.bfloat16)
    params = init_params(kp, N, C)

    cl = mefarg2_forward(f_u, params)
    cl = jax.block_until_ready(cl)
    assert cl.shape == (B, N) and cl.dtype == jnp.float32
    assert bool(jnp.all(jnp.isfinite(cl)))
    print("KERNEL_OK")
</pallas_src>

<mosaic_0001>
module attributes {stable_mosaic.version = 11 : i64} {
  func.func @_token_mean_kernel(%arg0: i32, %arg1: i32, %arg2: memref<2x6x8x128xbf16, #tpu.memory_space<vmem>>, %arg3: memref<2x6x128xf32, #tpu.memory_space<vmem>>) attributes {dimension_semantics = [#tpu.dimension_semantics<parallel>, #tpu.dimension_semantics<arbitrary>], iteration_bounds = array<i64: 1, 1>, scalar_prefetch = 0 : i64, scratch_operands = 0 : i64, tpu.core_type = #tpu.core_type<tc>, window_params = [{transform_indices = @transform_0, window_bounds = array<i64: 2, 6, 8, 128>}, {transform_indices = @transform_1, window_bounds = array<i64: 2, 6, 128>}]} {
    %c0 = arith.constant 0 : index
    %c0_0 = arith.constant 0 : index
    %c0_1 = arith.constant 0 : index
    %c0_2 = arith.constant 0 : index
    %0 = vector.load %arg2[%c0, %c0_0, %c0_1, %c0_2] : memref<2x6x8x128xbf16, #tpu.memory_space<vmem>>, vector<2x6x8x128xbf16>
    %1 = arith.extf %0 : vector<2x6x8x128xbf16> to vector<2x6x8x128xf32>
    %cst = arith.constant dense<0.000000e+00> : vector<2x6x128xf32>
    %2 = vector.multi_reduction <add>, %1, %cst [2] : vector<2x6x8x128xf32> to vector<2x6x128xf32>
    %cst_3 = arith.constant 1.250000e-01 : f32
    %3 = vector.broadcast %cst_3 : f32 to vector<2x6x128xf32>
    %4 = arith.mulf %2, %3 : vector<2x6x128xf32>
    %c0_i32 = arith.constant 0 : i32
    %5 = arith.cmpi eq, %arg1, %c0_i32 : i32
    %6 = arith.extui %5 : i1 to i32
    %c0_i32_4 = arith.constant 0 : i32
    %7 = arith.cmpi ne, %6, %c0_i32_4 : i32
    scf.if %7 {
      %c0_7 = arith.constant 0 : index
      %c0_8 = arith.constant 0 : index
      %c0_9 = arith.constant 0 : index
      %11 = vector.load %arg3[%c0_7, %c0_8, %c0_9] : memref<2x6x128xf32, #tpu.memory_space<vmem>>, vector<2x6x128xf32>
      tpu.vector_store %arg3[%c0_7, %c0_8, %c0_9], %4 {strides = array<i32>} : memref<2x6x128xf32, #tpu.memory_space<vmem>>, vector<2x6x128xf32>,
    } else {
    }
    %c0_i32_5 = arith.constant 0 : i32
    %8 = arith.cmpi ne, %arg1, %c0_i32_5 : i32
    %9 = arith.extui %8 : i1 to i32
    %c0_i32_6 = arith.constant 0 : i32
    %10 = arith.cmpi ne, %9, %c0_i32_6 : i32
    scf.if %10 {
      %c0_7 = arith.constant 0 : index
      %c0_8 = arith.constant 0 : index
      %c0_9 = arith.constant 0 : index
      %11 = vector.load %arg3[%c0_7, %c0_8, %c0_9] : memref<2x6x128xf32, #tpu.memory_space<vmem>>, vector<2x6x128xf32>
      %12 = arith.addf %11, %4 : vector<2x6x128xf32>
      %c0_10 = arith.constant 0 : index
      %c0_11 = arith.constant 0 : index
      %c0_12 = arith.constant 0 : index
      %13 = vector.load %arg3[%c0_10, %c0_11, %c0_12] : memref<2x6x128xf32, #tpu.memory_space<vmem>>, vector<2x6x128xf32>
      tpu.vector_store %arg3[%c0_10, %c0_11, %c0_12], %12 {strides = array<i32>} : memref<2x6x128xf32, #tpu.memory_space<vmem>>, vector<2x6x128xf32>,
    } else {
    }
    return
  }
  func.func @transform_0(%arg0: i32, %arg1: i32) -> (i32, i32, i32, i32) {
    %c0_i32 = arith.constant 0 : i32
    %c0_i32_0 = arith.constant 0 : i32
    %c0_i32_1 = arith.constant 0 : i32
    return %arg0, %c0_i32, %arg1, %c0_i32_0 : i32, i32, i32, i32
  }
  func.func @transform_1(%arg0: i32, %arg1: i32) -> (i32, i32, i32) {
    %c0_i32 = arith.constant 0 : i32
    %c0_i32_0 = arith.constant 0 : i32
    %c0_i32_1 = arith.constant 0 : i32
    return %arg0, %c0_i32, %c0_i32_0 : i32, i32, i32
  }
}

</mosaic_0001>

<llo_original>
// kernel: tpu_custom_call.1
$region0: #{tpu_custom_call.1}
  #allocation0 [shape = 'u32[]', space=smem, size = 0x4, offset = 0x4, fixed_abs, tag = 'smem constant byte address 0x4 - core index']
  #allocation1 [shape = 'u32[144,128]{1,0:T(1,128)}', space=vmem, size = 0x12000, scoped, tag = 'internal scratch']
  %s0 = inlined_call_operand.hbm [shape: bf16[2,6,8,128], index: 0, kind: input, shape index: {}]
  %s1 = inlined_call_operand.vmem [shape: f32[2,6,128], index: 1, kind: output, shape index: {}]
  %s2 = sld [smem:[#allocation0]]
  $region26: #{tpu_custom_call.1} parent=0
    _
  %s4 = ssub.s32 1, %s2
  %s5 = scalar_select 0, %s4, %s2
  $region1: #{tpu_custom_call.1} parent=0
    #allocation2 [shape = 'u8[24576]{0}', space=vmem, size = 0x6000, scoped, tag = 'input window, operand 0, single buffered']
    #allocation3 [shape = 's32[1]{0}', space=sflag, size = 0x4, scoped, tag = 'scoped memory for tpu_custom_call.1']
    %6 = vsyncpa [#allocation3], 0
    // Predicated region
    $region2: #{tpu_custom_call.1} parent=1 // pred_check
      _
    $region3: #{tpu_custom_call.1} parent=1 // pred_check_branch
      %8 = sbr.rel (0) target = $region5
    $region4: #{tpu_custom_call.1} parent=1 // pred_region
      %s10 = ssub.s32 768, 768
      %11 = vsyncadd [#allocation3], %s10
      %s12 = sshll.u32 [#allocation2], 4
      %s13 = int_to_ptr.vmem [resolvable:$true] %s12
      %18 = dma.hbm_to_vmem [thread:$0]  %s0, 768, %s13, [#allocation3], 64, 64, 4
    $region5: #{tpu_custom_call.1} parent=1 // pred_fallthru
      _
    // Predicated region
    $region6: #{tpu_custom_call.1} parent=1 // pred_check
      _
    $region7: #{tpu_custom_call.1} parent=1 // pred_check_branch
      %20 = sbr.rel (0) target = $region9
    $region8: #{tpu_custom_call.1} parent=1 // pred_region
      %21 = dma.done [#allocation3], 768
    $region9: #{tpu_custom_call.1} parent=1 // pred_fallthru
      _
    %v22 = vld [vmem:[#allocation2] sm:$0xf]
    %v23 = vld [vmem:[#allocation2 + $0x4] sm:$0xf]
    %v24 = vld [vmem:[#allocation2 + $0x8] sm:$0xf]
    %v25 = vld [vmem:[#allocation2 + $0xc] sm:$0xf]
    %v26 = vld [vmem:[#allocation2 + $0x10] sm:$0xf]
    %v27 = vld [vmem:[#allocation2 + $0x14] sm:$0xf]
    %v28 = vld [vmem:[#allocation2 + $0x18] sm:$0xf]
    %v29 = vld [vmem:[#allocation2 + $0x1c] sm:$0xf]
    %v30 = vld [vmem:[#allocation2 + $0x20] sm:$0xf]
    %v31 = vld [vmem:[#allocation2 + $0x24] sm:$0xf]
    %v32 = vld [vmem:[#allocation2 + $0x28] sm:$0xf]
    %v33 = vld [vmem:[#allocation2 + $0x2c] sm:$0xf]
    %v34 = vunpack.c.l.bf16 %v22
    %v35 = vunpack.c.l.bf16 %v23
    %v36 = vunpack.c.l.bf16 %v24
    %v37 = vunpack.c.l.bf16 %v25
    %v38 = vunpack.c.l.bf16 %v26
    %v39 = vunpack.c.l.bf16 %v27
    %v40 = vunpack.c.l.bf16 %v28
    %v41 = vunpack.c.l.bf16 %v29
    %v42 = vunpack.c.l.bf16 %v30
    %v43 = vunpack.c.l.bf16 %v31
    %v44 = vunpack.c.l.bf16 %v32
    %v45 = vunpack.c.l.bf16 %v33
    %v46 = vrot.slane %v34, 4
    %v47 = vadd.f32 %v34, %v46
    %v48 = vrot.slane %v47, 2
    %v49 = vadd.f32 %v47, %v48
    %v50 = vrot.slane %v49, 1
    %v51 = vadd.f32 %v49, %v50
    %v52 = vrot.slane %v35, 4
    %v53 = vadd.f32 %v35, %v52
    %v54 = vrot.slane %v53, 2
    %v55 = vadd.f32 %v53, %v54
    %v56 = vrot.slane %v55, 1
    %v57 = vadd.f32 %v55, %v56
    %v58 = vrot.slane %v36, 4
    %v59 = vadd.f32 %v36, %v58
    %v60 = vrot.slane %v59, 2
    %v61 = vadd.f32 %v59, %v60
    %v62 = vrot.slane %v61, 1
    %v63 = vadd.f32 %v61, %v62
    %v64 = vrot.slane %v37, 4
    %v65 = vadd.f32 %v37, %v64
    %v66 = vrot.slane %v65, 2
    %v67 = vadd.f32 %v65, %v66
    %v68 = vrot.slane %v67, 1
    %v69 = vadd.f32 %v67, %v68
    %v70 = vrot.slane %v38, 4
    %v71 = vadd.f32 %v38, %v70
    %v72 = vrot.slane %v71, 2
    %v73 = vadd.f32 %v71, %v72
    %v74 = vrot.slane %v73, 1
    %v75 = vadd.f32 %v73, %v74
    %v76 = vrot.slane %v39, 4
    %v77 = vadd.f32 %v39, %v76
    %v78 = vrot.slane %v77, 2
    %v79 = vadd.f32 %v77, %v78
    %v80 = vrot.slane %v79, 1
    %v81 = vadd.f32 %v79, %v80
    %v82 = vrot.slane %v40, 4
    %v83 = vadd.f32 %v40, %v82
    %v84 = vrot.slane %v83, 2
    %v85 = vadd.f32 %v83, %v84
    %v86 = vrot.slane %v85, 1
    %v87 = vadd.f32 %v85, %v86
    %v88 = vrot.slane %v41, 4
    %v89 = vadd.f32 %v41, %v88
    %v90 = vrot.slane %v89, 2
    %v91 = vadd.f32 %v89, %v90
    %v92 = vrot.slane %v91, 1
    %v93 = vadd.f32 %v91, %v92
    %v94 = vrot.slane %v42, 4
    %v95 = vadd.f32 %v42, %v94
    %v96 = vrot.slane %v95, 2
    %v97 = vadd.f32 %v95, %v96
    %v98 = vrot.slane %v97, 1
    %v99 = vadd.f32 %v97, %v98
    %v100 = vrot.slane %v43, 4
    %v101 = vadd.f32 %v43, %v100
    %v102 = vrot.slane %v101, 2
    %v103 = vadd.f32 %v101, %v102
    %v104 = vrot.slane %v103, 1
    %v105 = vadd.f32 %v103, %v104
    %v106 = vrot.slane %v44, 4
    %v107 = vadd.f32 %v44, %v106
    %v108 = vrot.slane %v107, 2
    %v109 = vadd.f32 %v107, %v108
    %v110 = vrot.slane %v109, 1
    %v111 = vadd.f32 %v109, %v110
    %v112 = vrot.slane %v45, 4
    %v113 = vadd.f32 %v45, %v112
    %v114 = vrot.slane %v113, 2
    %v115 = vadd.f32 %v113, %v114
    %v116 = vrot.slane %v115, 1
    %v117 = vadd.f32 %v115, %v116
    %v118 = vmul.f32 %v51, 0.125
    %v119 = vmul.f32 %v57, 0.125
    %v120 = vmul.f32 %v63, 0.125
    %v121 = vmul.f32 %v69, 0.125
    %v122 = vmul.f32 %v75, 0.125
    %v123 = vmul.f32 %v81, 0.125
    %v124 = vmul.f32 %v87, 0.125
    %v125 = vmul.f32 %v93, 0.125
    %v126 = vmul.f32 %v99, 0.125
    %v127 = vmul.f32 %v105, 0.125
    %v128 = vmul.f32 %v111, 0.125
    %v129 = vmul.f32 %v117, 0.125
    %p130 = scmp.eq.s32.totalorder 0, 0
    // Predicated region
    $region10: #{tpu_custom_call.1} parent=1 // pred_check
      %p131 = pneg %p130
    $region11: #{tpu_custom_call.1} parent=1 // pred_check_branch
      %133 = sbr.rel (%p131) target = $region13
    $region12: #{tpu_custom_call.1} parent=1 // pred_region
      %vm146 = vcmask 1041409
      %v147 = vsel %vm146, %v119, %v118
      %vm148 = vcmask 1042434
      %v149 = vsel %vm148, %v120, %v147
      %vm150 = vcmask 1043459
      %v151 = vsel %vm150, %v121, %v149
      %vm152 = vcmask 1044484
      %v153 = vsel %vm152, %v122, %v151
      %vm154 = vcmask 1045509
      %v155 = vsel %vm154, %v123, %v153
      %v156 = vsel %vm146, %v125, %v124
      %v157 = vsel %vm148, %v126, %v156
      %v158 = vsel %vm150, %v127, %v157
      %v159 = vsel %vm152, %v128, %v158
      %v160 = vsel %vm154, %v129, %v159
      %163 = vst [vmem:[%s1] sm:$0x3f] %v155
      %164 = vst [vmem:[%s1 + $0x8] sm:$0x3f] %v160
    $region13: #{tpu_custom_call.1} parent=1 // pred_fallthru
      _
    %p165 = scmp.ne.s32.totalorder 0, 0
    // Predicated region
    $region14: #{tpu_custom_call.1} parent=1 // pred_check
      %p166 = pneg %p165
    $region15: #{tpu_custom_call.1} parent=1 // pred_check_branch
      %168 = sbr.rel (%p166) target = $region17
    $region16: #{tpu_custom_call.1} parent=1 // pred_region
      %v169 = vld [vmem:[%s1] sm:$0x3f]
      %v170 = vld [vmem:[%s1 + $0x8] sm:$0x3f]
      %vm183 = vcmask 1041409
      %v184 = vsel %vm183, %v119, %v118
      %vm185 = vcmask 1042434
      %v186 = vsel %vm185, %v120, %v184
      %vm187 = vcmask 1043459
      %v188 = vsel %vm187, %v121, %v186
      %vm189 = vcmask 1044484
      %v190 = vsel %vm189, %v122, %v188
      %vm191 = vcmask 1045509
      %v192 = vsel %vm191, %v123, %v190
      %v193 = vsel %vm183, %v125, %v124
      %v194 = vsel %vm185, %v126, %v193
      %v195 = vsel %vm187, %v127, %v194
      %v196 = vsel %vm189, %v128, %v195
      %v197 = vsel %vm191, %v129, %v196
      %v200 = vadd.f32 %v169, %v192
      %v201 = vadd.f32 %v170, %v197
      %202 = vst [vmem:[%s1] sm:$0x3f] %v200
      %203 = vst [vmem:[%s1 + $0x8] sm:$0x3f] %v201
    $region17: #{tpu_custom_call.1} parent=1 // pred_fallthru
      _
    // Predicated region
    $region18: #{tpu_custom_call.1} parent=1 // pred_check
      _
    $region19: #{tpu_custom_call.1} parent=1 // pred_check_branch
      %205 = sbr.rel (0) target = $region21
    $region20: #{tpu_custom_call.1} parent=1 // pred_region
      _
    $region21: #{tpu_custom_call.1} parent=1 // pred_fallthru
      _
    // Predicated region
    $region22: #{tpu_custom_call.1} parent=1 // pred_check
      _
    $region23: #{tpu_custom_call.1} parent=1 // pred_check_branch
      %207 = sbr.rel (0) target = $region25
    $region24: #{tpu_custom_call.1} parent=1 // pred_region
      _
    $region25: #{tpu_custom_call.1} parent=1 // pred_fallthru
      _
    %208 = vsyncpa [#allocation3], 1

</llo_original>
